<compile_context>
chip_gen: v6e
topology: v6e:2x2x1
jax: 0.10.0
libtpu: 0.0.40
codegen_flags: <defaults>
</compile_context>

<pallas_src>
import jax
import jax.numpy as jnp
from jax.experimental import pallas as pl
from jax.experimental.pallas import tpu as pltpu

_LANE = 128
_SUBLANE = 8


def _round_up(x, m):
    return (x + m - 1) // m * m


def _vmem_capacity_bytes():
    try:
        return int(pltpu.get_tpu_info().vmem_capacity_bytes)
    except Exception:
        return 64 * 2**20  # conservative (v7x-sized) fallback


def _make_kernel(aggr_method, combine, use_bias, apply_relu, k_neighbors):
    """Fused SageGCN tile kernel.

    Refs: src (tile_n, D), nbr (tile_n, K, D), W_self (D, Hp), W_nbr (D, Hp),
          [bias (1, Hp)], out (tile_n, Hp | 2*Hp).
    """
    inv_k = 1.0 / float(k_neighbors)

    def kernel(*refs):
        if use_bias:
            src_ref, nbr_ref, wself_ref, wnbr_ref, b_ref, out_ref = refs
        else:
            src_ref, nbr_ref, wself_ref, wnbr_ref, out_ref = refs
            b_ref = None

        # Self path: (tile_n, D) @ (D, Hp), f32 accumulation on the MXU.
        self_h = jnp.dot(src_ref[...], wself_ref[...],
                         preferred_element_type=jnp.float32)

        # Neighbor path: pre-reduce the native (tile_n, K, D) block over K
        # (f32 accumulation for sum/mean), then one (tile_n, D) @ (D, Hp) matmul.
        x = nbr_ref[...]
        if aggr_method == "max":
            aggr = jnp.max(x, axis=1)
        else:
            aggr = jnp.sum(x.astype(jnp.float32), axis=1)
            if aggr_method == "mean":
                aggr = aggr * inv_k
            aggr = aggr.astype(x.dtype)
        nbr_h = jnp.dot(aggr, wnbr_ref[...], preferred_element_type=jnp.float32)

        if b_ref is not None:
            nbr_h = nbr_h + b_ref[...].astype(jnp.float32)

        if combine == "sum":
            h = self_h + nbr_h
            if apply_relu:
                h = jnp.maximum(h, 0.0)
            out_ref[...] = h.astype(out_ref.dtype)
        else:  # concat: two lane-aligned static-slice stores into one output block.
            half = out_ref.shape[-1] // 2
            if apply_relu:
                self_h = jnp.maximum(self_h, 0.0)
                nbr_h = jnp.maximum(nbr_h, 0.0)
            out_ref[:, :half] = self_h.astype(out_ref.dtype)
            out_ref[:, half:] = nbr_h.astype(out_ref.dtype)

    return kernel


def sage_gcn_forward(src_node_features, neighbor_node_features,
                     weight_self, weight_nbr, nbr_bias=None, *,
                     aggr_neighbor_method="mean",
                     aggr_hidden_method="sum",
                     activation=True,
                     out_dtype=jnp.float32,
                     tile_n=None,
                     single_buffer_weights=True):
    """Fused SageGCN forward (residual_block=False).

    src_node_features: (N, D); neighbor_node_features: (N, K, D)
    weight_self, weight_nbr: (D, H); nbr_bias: (H,) or None.
    Returns (N, H) for 'sum', (N, 2H) for 'concat' in `out_dtype`.
    """
    assert aggr_neighbor_method in ("mean", "sum", "max")
    assert aggr_hidden_method in ("sum", "concat")

    N, K, D = neighbor_node_features.shape
    Ns, Ds = src_node_features.shape
    assert Ns == N and Ds == D, "src / neighbor shape mismatch"
    Dw, H = weight_nbr.shape
    assert Dw == D and weight_self.shape == (D, H), "weight shape mismatch"

    x_bytes = jnp.dtype(neighbor_node_features.dtype).itemsize
    out_dtype = jnp.dtype(out_dtype)
    out_bytes = out_dtype.itemsize

    # ---- lane-dense output width (zero-padded lanes are sliced off on return) -----
    Hp = _round_up(H, _LANE)
    Hout_p = Hp if aggr_hidden_method == "sum" else 2 * Hp

    # ---- weights padded to Hp columns (padded cols -> zeros in padded lanes) ------
    if Hp == H:
        w_self_p, w_nbr_p = weight_self, weight_nbr
    else:
        w_self_p = jnp.zeros((D, Hp), weight_self.dtype).at[:, :H].set(weight_self)
        w_nbr_p = jnp.zeros((D, Hp), weight_nbr.dtype).at[:, :H].set(weight_nbr)

    use_bias = nbr_bias is not None
    if use_bias:
        bias_p = jnp.zeros((1, Hp), jnp.float32).at[0, :H].set(
            nbr_bias.astype(jnp.float32))

    w_bytes_total = int(w_self_p.size * jnp.dtype(w_self_p.dtype).itemsize
                        + w_nbr_p.size * jnp.dtype(w_nbr_p.dtype).itemsize
                        + (Hp * 4 if use_bias else 0))

    # ---- generation-aware VMEM budget (includes weight footprint) -----------------
    vmem_cap = _vmem_capacity_bytes()
    cap_margin = vmem_cap - 8 * 2**20          # leave headroom for internal scratch
    budget = min(int(vmem_cap * 0.7), cap_margin)

    row_bytes = (D + K * D) * x_bytes + Hout_p * out_bytes

    def _pipeline_need(tn):
        # 2x node tiles (double-buffered) + up to 2x resident weights + slack.
        return 2 * tn * row_bytes + 2 * w_bytes_total + (2 << 20)

    if tile_n is None:
        tile_n = 1024 if vmem_cap >= 96 * 2**20 else 512
    tile_n = max(_SUBLANE, _round_up(min(tile_n, _round_up(N, _SUBLANE)), _SUBLANE))
    while tile_n > _SUBLANE and _pipeline_need(tile_n) > budget:
        tile_n = max(_SUBLANE, _round_up(tile_n // 2, _SUBLANE))
    N_pad = _round_up(N, tile_n)

    # v7x megacore: make sure the "parallel" axis has >= 2 steps when possible.
    if N_pad // tile_n < 2 and tile_n > _SUBLANE:
        tile_n = max(_SUBLANE, _round_up(tile_n // 2, _SUBLANE))
        N_pad = _round_up(N, tile_n)

    src_p = src_node_features
    nbr_p = neighbor_node_features
    if N_pad != N:
        src_p = jnp.pad(src_p, ((0, N_pad - N), (0, 0)))
        nbr_p = jnp.pad(nbr_p, ((0, N_pad - N), (0, 0), (0, 0)))

    vmem_need = _pipeline_need(tile_n)
    vmem_limit = int(min(max(vmem_need, 16 * 2**20), cap_margin))
    if vmem_limit < vmem_need:      # never clamp below the actual need
        vmem_limit = int(vmem_need)

    flops = 4 * N_pad * D * Hp + N_pad * K * D   # two matmuls + K-reduce
    bytes_accessed = int(N_pad * (D + K * D) * x_bytes + w_bytes_total
                         + N_pad * Hout_p * out_bytes)
    cost = pl.CostEstimate(flops=int(flops), transcendentals=0,
                           bytes_accessed=bytes_accessed)

    kernel = _make_kernel(aggr_neighbor_method, aggr_hidden_method, use_bias,
                          bool(activation), K)

    args = [src_p, nbr_p, w_self_p, w_nbr_p]
    if use_bias:
        args.append(bias_p)
    out_spec = pl.BlockSpec((tile_n, Hout_p), lambda i: (i, 0))

    def _build_in_specs(resident_mode):
        def resident(shape):
            imap = lambda i: (0,) * len(shape)
            if resident_mode is None:
                return pl.BlockSpec(shape, imap)
            return pl.BlockSpec(shape, imap, pipeline_mode=resident_mode)

        specs = [
            pl.BlockSpec((tile_n, D), lambda i: (i, 0)),        # src node tile
            pl.BlockSpec((tile_n, K, D), lambda i: (i, 0, 0)),  # neighbor tile (native layout)
            resident((D, Hp)),                                  # W_self (resident)
            resident((D, Hp)),                                  # W_nbr (resident)
        ]
        if use_bias:
            specs.append(resident((1, Hp)))
        return specs

    def _call(resident_mode):
        return pl.pallas_call(
            kernel,
            out_shape=jax.ShapeDtypeStruct((N_pad, Hout_p), out_dtype),
            grid_spec=pltpu.PrefetchScalarGridSpec(
                num_scalar_prefetch=0,
                grid=(N_pad // tile_n,),
                in_specs=_build_in_specs(resident_mode),
                out_specs=out_spec,
            ),
            compiler_params=pltpu.CompilerParams(
                dimension_semantics=("parallel",),
                vmem_limit_bytes=vmem_limit,
            ),
            cost_estimate=cost,
        )(*args)

    if single_buffer_weights:
        try:
            out_p = _call(pl.Buffered(1))
        except Exception:
            # pipeline_mode=Buffered(1) unsupported on this jax version -> default buffering.
            out_p = _call(None)
    else:
        out_p = _call(None)

    # ---- return path: skip post-kernel copies when the padded layout is exact -----
    if aggr_hidden_method == "sum":
        if N_pad == N and Hp == H:
            return out_p
        return out_p[:N, :H]
    if Hp == H:   # output block is already [self | nbr] with no lane padding
        return out_p if N_pad == N else out_p[:N]
    return jnp.concatenate([out_p[:N, :H], out_p[:N, Hp:Hp + H]], axis=1)


def _reference(src, nbr, w_self, w_nbr, bias, aggr_method, hidden_method,
               activation=True):
    x = nbr.astype(jnp.float32)
    if aggr_method == "mean":
        a = x.mean(axis=1)
    elif aggr_method == "sum":
        a = x.sum(axis=1)
    else:
        a = x.max(axis=1)
    nh = a @ w_nbr.astype(jnp.float32)
    if bias is not None:
        nh = nh + bias.astype(jnp.float32)
    sh = src.astype(jnp.float32) @ w_self.astype(jnp.float32)
    h = sh + nh if hidden_method == "sum" else jnp.concatenate([sh, nh], axis=1)
    return jnp.maximum(h, 0.0) if activation else h


if __name__ == "__main__":
    # Small shapes consistent with the module: num_nodes=16, K=8 neighbors,
    # input_dim=32, hidden_dim=32.
    N, K, D, Hdim = 16, 8, 32, 32

    key = jax.random.PRNGKey(0)
    k_src, k_nbr, k_ws, k_wn, k_b = jax.random.split(key, 5)

    src = jax.random.normal(k_src, (N, D), dtype=jnp.float32)
    nbr = jax.random.normal(k_nbr, (N, K, D), dtype=jnp.float32)

    # kaiming_uniform_ on a (input_dim, output_dim) tensor: fan_in = size(1),
    # gain = sqrt(2)  =>  bound = sqrt(6 / output_dim).
    bound = float(jnp.sqrt(6.0 / Hdim))
    w_self = jax.random.uniform(k_ws, (D, Hdim), minval=-bound, maxval=bound,
                                dtype=jnp.float32)
    w_nbr = jax.random.uniform(k_wn, (D, Hdim), minval=-bound, maxval=bound,
                               dtype=jnp.float32)
    bias = jax.random.normal(k_b, (Hdim,), dtype=jnp.float32) * 0.1

    # f32 correctness across aggregation / combination / bias / activation paths.
    configs = [
        ("mean", "sum", None, True),
        ("sum", "sum", None, True),
        ("max", "sum", None, False),
        ("max", "concat", None, True),
        ("mean", "concat", bias, True),
    ]
    for aggr_m, hid_m, b, act in configs:
        out = sage_gcn_forward(src, nbr, w_self, w_nbr, b,
                               aggr_neighbor_method=aggr_m,
                               aggr_hidden_method=hid_m,
                               activation=act)
        out = jax.block_until_ready(out)
        ref = _reference(src, nbr, w_self, w_nbr, b, aggr_m, hid_m, act)
        assert out.shape == ref.shape, f"shape mismatch for {aggr_m}/{hid_m}"
        assert jnp.allclose(out, ref, atol=1e-4, rtol=1e-4), \
            f"mismatch vs reference for {aggr_m}/{hid_m}"

    # bf16 streaming path (halves HBM traffic; f32 MXU accumulation inside kernel).
    out_bf16 = sage_gcn_forward(src.astype(jnp.bfloat16), nbr.astype(jnp.bfloat16),
                                w_self.astype(jnp.bfloat16),
                                w_nbr.astype(jnp.bfloat16),
                                aggr_neighbor_method="mean",
                                aggr_hidden_method="sum",
                                activation=True, out_dtype=jnp.bfloat16)
    out_bf16 = jax.block_until_ready(out_bf16)
    ref = _reference(src, nbr, w_self, w_nbr, None, "mean", "sum", True)
    assert out_bf16.shape == ref.shape
    assert jnp.allclose(out_bf16.astype(jnp.float32), ref, atol=0.1, rtol=0.1), \
        "bf16 path mismatch vs f32 reference"

    print("KERNEL_OK")
</pallas_src>

<mosaic_0001>
module attributes {stable_mosaic.version = 11 : i64} {
  func.func @kernel(%arg0: i32, %arg1: memref<8x32xf32, #tpu.memory_space<vmem>>, %arg2: memref<8x8x32xf32, #tpu.memory_space<vmem>>, %arg3: memref<32x128xf32, #tpu.memory_space<vmem>>, %arg4: memref<32x128xf32, #tpu.memory_space<vmem>>, %arg5: memref<8x128xf32, #tpu.memory_space<vmem>>) attributes {dimension_semantics = [#tpu.dimension_semantics<parallel>], iteration_bounds = array<i64: 2>, scalar_prefetch = 0 : i64, scratch_operands = 0 : i64, tpu.core_type = #tpu.core_type<tc>, window_params = [{transform_indices = @transform_0, window_bounds = array<i64: 8, 32>}, {transform_indices = @transform_1, window_bounds = array<i64: 8, 8, 32>}, {pipeline_mode = #tpu.pipeline_mode<synchronous>, transform_indices = @transform_2, window_bounds = array<i64: 32, 128>}, {pipeline_mode = #tpu.pipeline_mode<synchronous>, transform_indices = @transform_3, window_bounds = array<i64: 32, 128>}, {transform_indices = @transform_4, window_bounds = array<i64: 8, 128>}]} {
    %c0 = arith.constant 0 : index
    %c0_0 = arith.constant 0 : index
    %0 = vector.load %arg1[%c0, %c0_0] : memref<8x32xf32, #tpu.memory_space<vmem>>, vector<8x32xf32>
    %c0_1 = arith.constant 0 : index
    %c0_2 = arith.constant 0 : index
    %1 = vector.load %arg3[%c0_1, %c0_2] : memref<32x128xf32, #tpu.memory_space<vmem>>, vector<32x128xf32>
    %cst = arith.constant dense<0.000000e+00> : vector<8x128xf32>
    %2 = tpu.matmul %0, %1, %cst {dimension_numbers = #tpu.dot_dimension_numbers<[1], [0], [0], [1], [0, 0, 1, 1], [], []>} : vector<8x32xf32>, vector<32x128xf32>, vector<8x128xf32> -> vector<8x128xf32>
    %c0_3 = arith.constant 0 : index
    %c0_4 = arith.constant 0 : index
    %c0_5 = arith.constant 0 : index
    %3 = vector.load %arg2[%c0_3, %c0_4, %c0_5] : memref<8x8x32xf32, #tpu.memory_space<vmem>>, vector<8x8x32xf32>
    %cst_6 = arith.constant dense<0.000000e+00> : vector<8x32xf32>
    %4 = vector.multi_reduction <add>, %3, %cst_6 [1] : vector<8x8x32xf32> to vector<8x32xf32>
    %cst_7 = arith.constant 1.250000e-01 : f32
    %5 = vector.broadcast %cst_7 : f32 to vector<8x32xf32>
    %6 = arith.mulf %4, %5 : vector<8x32xf32>
    %c0_8 = arith.constant 0 : index
    %c0_9 = arith.constant 0 : index
    %7 = vector.load %arg4[%c0_8, %c0_9] : memref<32x128xf32, #tpu.memory_space<vmem>>, vector<32x128xf32>
    %cst_10 = arith.constant dense<0.000000e+00> : vector<8x128xf32>
    %8 = tpu.matmul %6, %7, %cst_10 {dimension_numbers = #tpu.dot_dimension_numbers<[1], [0], [0], [1], [0, 0, 1, 1], [], []>} : vector<8x32xf32>, vector<32x128xf32>, vector<8x128xf32> -> vector<8x128xf32>
    %9 = arith.addf %2, %8 : vector<8x128xf32>
    %cst_11 = arith.constant 0.000000e+00 : f32
    %10 = vector.broadcast %cst_11 : f32 to vector<8x128xf32>
    %11 = arith.maximumf %9, %10 : vector<8x128xf32>
    %c0_12 = arith.constant 0 : index
    %c0_13 = arith.constant 0 : index
    %12 = vector.load %arg5[%c0_12, %c0_13] : memref<8x128xf32, #tpu.memory_space<vmem>>, vector<8x128xf32>
    tpu.vector_store %arg5[%c0_12, %c0_13], %11 {strides = array<i32>} : memref<8x128xf32, #tpu.memory_space<vmem>>, vector<8x128xf32>,
    return
  }
  func.func @transform_0(%arg0: i32) -> (i32, i32) {
    %c0_i32 = arith.constant 0 : i32
    %c0_i32_0 = arith.constant 0 : i32
    return %arg0, %c0_i32 : i32, i32
  }
  func.func @transform_1(%arg0: i32) -> (i32, i32, i32) {
    %c0_i32 = arith.constant 0 : i32
    %c0_i32_0 = arith.constant 0 : i32
    %c0_i32_1 = arith.constant 0 : i32
    return %arg0, %c0_i32, %c0_i32_0 : i32, i32, i32
  }
  func.func @transform_2(%arg0: i32) -> (i32, i32) {
    %c0_i32 = arith.constant 0 : i32
    %c0_i32_0 = arith.constant 0 : i32
    %c0_i32_1 = arith.constant 0 : i32
    return %c0_i32, %c0_i32_0 : i32, i32
  }
  func.func @transform_3(%arg0: i32) -> (i32, i32) {
    %c0_i32 = arith.constant 0 : i32
    %c0_i32_0 = arith.constant 0 : i32
    %c0_i32_1 = arith.constant 0 : i32
    return %c0_i32, %c0_i32_0 : i32, i32
  }
  func.func @transform_4(%arg0: i32) -> (i32, i32) {
    %c0_i32 = arith.constant 0 : i32
    %c0_i32_0 = arith.constant 0 : i32
    return %arg0, %c0_i32 : i32, i32
  }
}

module attributes {stable_mosaic.version = 11 : i64} {
  func.func @kernel(%arg0: i32, %arg1: memref<8x32xf32, #tpu.memory_space<vmem>>, %arg2: memref<8x8x32xf32, #tpu.memory_space<vmem>>, %arg3: memref<32x128xf32, #tpu.memory_space<vmem>>, %arg4: memref<32x128xf32, #tpu.memory_space<vmem>>, %arg5: memref<8x128xf32, #tpu.memory_space<vmem>>) attributes {dimension_semantics = [#tpu.dimension_semantics<parallel>], iteration_bounds = array<i64: 2>, scalar_prefetch = 0 : i64, scratch_operands = 0 : i64, tpu.core_type = #tpu.core_type<tc>, window_params = [{transform_indices = @transform_0, window_bounds = array<i64: 8, 32>}, {transform_indices = @transform_1, window_bounds = array<i64: 8, 8, 32>}, {pipeline_mode = #tpu.pipeline_mode<synchronous>, transform_indices = @transform_2, window_bounds = array<i64: 32, 128>}, {pipeline_mode = #tpu.pipeline_mode<synchronous>, transform_indices = @transform_3, window_bounds = array<i64: 32, 128>}, {transform_indices = @transform_4, window_bounds = array<i64: 8, 128>}]} {
    %c0 = arith.constant 0 : index
    %c0_0 = arith.constant 0 : index
    %0 = vector.load %arg1[%c0, %c0_0] : memref<8x32xf32, #tpu.memory_space<vmem>>, vector<8x32xf32>
    %c0_1 = arith.constant 0 : index
    %c0_2 = arith.constant 0 : index
    %1 = vector.load %arg3[%c0_1, %c0_2] : memref<32x128xf32, #tpu.memory_space<vmem>>, vector<32x128xf32>
    %cst = arith.constant dense<0.000000e+00> : vector<8x128xf32>
    %2 = tpu.matmul %0, %1, %cst {dimension_numbers = #tpu.dot_dimension_numbers<[1], [0], [0], [1], [0, 0, 1, 1], [], []>} : vector<8x32xf32>, vector<32x128xf32>, vector<8x128xf32> -> vector<8x128xf32>
    %c0_3 = arith.constant 0 : index
    %c0_4 = arith.constant 0 : index
    %c0_5 = arith.constant 0 : index
    %3 = vector.load %arg2[%c0_3, %c0_4, %c0_5] : memref<8x8x32xf32, #tpu.memory_space<vmem>>, vector<8x8x32xf32>
    %cst_6 = arith.constant dense<0.000000e+00> : vector<8x32xf32>
    %4 = vector.multi_reduction <add>, %3, %cst_6 [1] : vector<8x8x32xf32> to vector<8x32xf32>
    %cst_7 = arith.constant 1.250000e-01 : f32
    %5 = vector.broadcast %cst_7 : f32 to vector<8x32xf32>
    %6 = arith.mulf %4, %5 : vector<8x32xf32>
    %c0_8 = arith.constant 0 : index
    %c0_9 = arith.constant 0 : index
    %7 = vector.load %arg4[%c0_8, %c0_9] : memref<32x128xf32, #tpu.memory_space<vmem>>, vector<32x128xf32>
    %cst_10 = arith.constant dense<0.000000e+00> : vector<8x128xf32>
    %8 = tpu.matmul %6, %7, %cst_10 {dimension_numbers = #tpu.dot_dimension_numbers<[1], [0], [0], [1], [0, 0, 1, 1], [], []>} : vector<8x32xf32>, vector<32x128xf32>, vector<8x128xf32> -> vector<8x128xf32>
    %9 = arith.addf %2, %8 : vector<8x128xf32>
    %cst_11 = arith.constant 0.000000e+00 : f32
    %10 = vector.broadcast %cst_11 : f32 to vector<8x128xf32>
    %11 = arith.maximumf %9, %10 : vector<8x128xf32>
    %c0_12 = arith.constant 0 : index
    %c0_13 = arith.constant 0 : index
    %12 = vector.load %arg5[%c0_12, %c0_13] : memref<8x128xf32, #tpu.memory_space<vmem>>, vector<8x128xf32>
    tpu.vector_store %arg5[%c0_12, %c0_13], %11 {strides = array<i32>} : memref<8x128xf32, #tpu.memory_space<vmem>>, vector<8x128xf32>,
    return
  }
  func.func @transform_0(%arg0: i32) -> (i32, i32) {
    %c0_i32 = arith.constant 0 : i32
    %c0_i32_0 = arith.constant 0 : i32
    return %arg0, %c0_i32 : i32, i32
  }
  func.func @transform_1(%arg0: i32) -> (i32, i32, i32) {
    %c0_i32 = arith.constant 0 : i32
    %c0_i32_0 = arith.constant 0 : i32
    %c0_i32_1 = arith.constant 0 : i32
    return %arg0, %c0_i32, %c0_i32_0 : i32, i32, i32
  }
  func.func @transform_2(%arg0: i32) -> (i32, i32) {
    %c0_i32 = arith.constant 0 : i32
    %c0_i32_0 = arith.constant 0 : i32
    %c0_i32_1 = arith.constant 0 : i32
    return %c0_i32, %c0_i32_0 : i32, i32
  }
  func.func @transform_3(%arg0: i32) -> (i32, i32) {
    %c0_i32 = arith.constant 0 : i32
    %c0_i32_0 = arith.constant 0 : i32
    %c0_i32_1 = arith.constant 0 : i32
    return %c0_i32, %c0_i32_0 : i32, i32
  }
  func.func @transform_4(%arg0: i32) -> (i32, i32) {
    %c0_i32 = arith.constant 0 : i32
    %c0_i32_0 = arith.constant 0 : i32
    return %arg0, %c0_i32 : i32, i32
  }
}

</mosaic_0001>

<llo_original>
// kernel: tpu_custom_call.1
$region0: #{tpu_custom_call.1}
  #allocation0 [shape = 'u32[]', space=smem, size = 0x4, offset = 0x4, fixed_abs, tag = 'smem constant byte address 0x4 - core index']
  #allocation1 [shape = 'u32[144,128]{1,0:T(1,128)}', space=vmem, size = 0x12000, scoped, tag = 'internal scratch']
  %s0 = inlined_call_operand.hbm [shape: f32[16,32], index: 0, kind: input, shape index: {}]
  %s1 = inlined_call_operand.hbm [shape: f32[16,8,32], index: 1, kind: input, shape index: {}]
  %s2 = inlined_call_operand.hbm [shape: f32[32,128], index: 2, kind: input, shape index: {}]
  %s3 = inlined_call_operand.hbm [shape: f32[32,128], index: 3, kind: input, shape index: {}]
  %s4 = inlined_call_operand.hbm [shape: f32[16,128], index: 4, kind: output, shape index: {}]
  %s5 = sld [smem:[#allocation0]]
  $region65: #{tpu_custom_call.1} parent=0
    _
  %s7 = ssub.s32 1, %s5
  %s8 = scalar_select 0, %s7, %s5
  $region1: #{tpu_custom_call.1} parent=0
    #allocation2 [shape = 'u8[8192]{0}', space=vmem, size = 0x2000, scoped, tag = 'input window, operand 0']
    #allocation3 [shape = 's32[2]{0}', space=sflag, size = 0x8, scoped, tag = 'scoped memory for tpu_custom_call.1']
    #allocation4 [shape = 's32[2]{0}', space=sflag, size = 0x8, scoped, tag = 'scoped memory for tpu_custom_call.1']
    #allocation5 [shape = 'u8[65536]{0}', space=vmem, size = 0x10000, scoped, tag = 'input window, operand 1']
    #allocation6 [shape = 's32[2]{0}', space=sflag, size = 0x8, scoped, tag = 'scoped memory for tpu_custom_call.1']
    #allocation7 [shape = 'u8[16384]{0}', space=vmem, size = 0x4000, scoped, tag = 'input window, operand 2, single buffered']
    #allocation8 [shape = 'u8[16384]{0}', space=vmem, size = 0x4000, scoped, tag = 'input window, operand 3, single buffered']
    #allocation9 [shape = 's32[1]{0}', space=sflag, size = 0x4, scoped, tag = 'scoped memory for tpu_custom_call.1']
    #allocation10 [shape = 'u8[8192]{0}', space=vmem, size = 0x2000, scoped, tag = 'output window, operand 0']
    %9 = vsyncpa [#allocation3], 0
    %s10 = scalar_lea.sflag [#allocation3], 1
    %11 = vsyncpa %s10, 0
    %12 = vsyncpa [#allocation6], 0
    %s13 = scalar_lea.sflag [#allocation6], 1
    %14 = vsyncpa %s13, 0
    %15 = vsyncpa [#allocation9], 0
    %16 = vsyncpa [#allocation4], 0
    %s17 = scalar_lea.sflag [#allocation4], 1
    %18 = vsyncpa %s17, 0
    loop: start=0, step=1, limit=4
    $region2: #{tpu_custom_call.1} parent=1 // loop_pre_header
      _
    $region3: #{tpu_custom_call.1} parent=1 // loop_header
      %s20 = sphi 0, %s24
      %p21 = scmp.ge.s32.totalorder %s20, 4
      %s30 = sphi 0, %s32
      %s33 = sphi 0, %s30
      %s34 = sphi 0, %s33
      %s50 = sphi 0, %s34
      %s56 = sphi 0, %s58
      %s59 = sphi 0, %s56
      %s60 = sphi 0, %s59
      %s76 = sphi 0, %s60
      %s80 = sphi 0, %s80
      %s82 = sphi 0, %s80
      %s83 = sphi 0, %s82
      %s97 = sphi 0, %s83
      %s101 = sphi 0, %s101
      %s103 = sphi 0, %s101
      %s104 = sphi 0, %s103
      %s118 = sphi 0, %s104
      %s124 = sphi 0, %s126
      %s127 = sphi 0, %s124
      %s128 = sphi 0, %s127
      %s144 = sphi 0, %s128
    $region4: #{tpu_custom_call.1} parent=1 // loop_header_branch
      %23 = sbr.rel (%p21) target = $region8
    $region5: #{tpu_custom_call.1} parent=1 // loop_body
      %s25 = ssub.s32 %s20, 1
      %s26 = ssub.s32 %s20, 2
      %s27 = sadd.s32 %s20, 1
      %s28 = ssub.s32 %s20, %s27
      %p29 = scmp.eq.s32.totalorder %s28, 0
      %s31 = sadd.s32 %s30, 1
      %s32 = scalar_select %p29, %s30, %s31
      %p35 = pneg %p29
      %p36 = scmp.eq.s32.totalorder %s20, 1
      %p37 = por %p35, %p36
      %p38 = scmp.ne.s32.totalorder %s30, %s33
      %p39 = scmp.eq.s32.totalorder %s20, 0
      %p40 = por %p38, %p39
      %p41 = scmp.ne.s32.totalorder %s30, %s33
      %p42 = scmp.eq.s32.totalorder %s25, 1
      %p43 = por %p41, %p42
      %p44 = scmp.ne.s32.totalorder %s33, %s34
      %p45 = scmp.eq.s32.totalorder %s25, 0
      %p46 = por %p44, %p45
      %p47 = scmp.ne.s32.totalorder %s33, %s34
      %p48 = scmp.eq.s32.totalorder %s26, 1
      %p49 = por %p47, %p48
      %p51 = scmp.ne.s32.totalorder %s34, %s50
      %p52 = scmp.eq.s32.totalorder %s26, 0
      %p53 = por %p51, %p52
      %s54 = ssub.s32 %s20, %s27
      %p55 = scmp.eq.s32.totalorder %s54, 0
      %s57 = sadd.s32 %s56, 1
      %s58 = scalar_select %p55, %s56, %s57
      %p61 = pneg %p55
      %p62 = scmp.eq.s32.totalorder %s20, 1
      %p63 = por %p61, %p62
      %p64 = scmp.ne.s32.totalorder %s56, %s59
      %p65 = scmp.eq.s32.totalorder %s20, 0
      %p66 = por %p64, %p65
      %p67 = scmp.ne.s32.totalorder %s56, %s59
      %p68 = scmp.eq.s32.totalorder %s25, 1
      %p69 = por %p67, %p68
      %p70 = scmp.ne.s32.totalorder %s59, %s60
      %p71 = scmp.eq.s32.totalorder %s25, 0
      %p72 = por %p70, %p71
      %p73 = scmp.ne.s32.totalorder %s59, %s60
      %p74 = scmp.eq.s32.totalorder %s26, 1
      %p75 = por %p73, %p74
      %p77 = scmp.ne.s32.totalorder %s60, %s76
      %p78 = scmp.eq.s32.totalorder %s26, 0
      %p79 = por %p77, %p78
      %s81 = sadd.s32 %s80, 1
      %p84 = scmp.eq.s32.totalorder %s20, 1
      %p85 = scmp.ne.s32.totalorder %s80, %s82
      %p86 = scmp.eq.s32.totalorder %s20, 0
      %p87 = por %p85, %p86
      %p88 = scmp.ne.s32.totalorder %s80, %s82
      %p89 = scmp.eq.s32.totalorder %s25, 1
      %p90 = por %p88, %p89
      %p91 = scmp.ne.s32.totalorder %s82, %s83
      %p92 = scmp.eq.s32.totalorder %s25, 0
      %p93 = por %p91, %p92
      %p94 = scmp.ne.s32.totalorder %s82, %s83
      %p95 = scmp.eq.s32.totalorder %s26, 1
      %p96 = por %p94, %p95
      %p98 = scmp.ne.s32.totalorder %s83, %s97
      %p99 = scmp.eq.s32.totalorder %s26, 0
      %p100 = por %p98, %p99
      %s102 = sadd.s32 %s101, 1
      %p105 = scmp.eq.s32.totalorder %s20, 1
      %p106 = scmp.ne.s32.totalorder %s101, %s103
      %p107 = scmp.eq.s32.totalorder %s20, 0
      %p108 = por %p106, %p107
      %p109 = scmp.ne.s32.totalorder %s101, %s103
      %p110 = scmp.eq.s32.totalorder %s25, 1
      %p111 = por %p109, %p110
      %p112 = scmp.ne.s32.totalorder %s103, %s104
      %p113 = scmp.eq.s32.totalorder %s25, 0
      %p114 = por %p112, %p113
      %p115 = scmp.ne.s32.totalorder %s103, %s104
      %p116 = scmp.eq.s32.totalorder %s26, 1
      %p117 = por %p115, %p116
      %p119 = scmp.ne.s32.totalorder %s104, %s118
      %p120 = scmp.eq.s32.totalorder %s26, 0
      %p121 = por %p119, %p120
      %s122 = ssub.s32 %s20, %s27
      %p123 = scmp.eq.s32.totalorder %s122, 0
      %s125 = sadd.s32 %s124, 1
      %s126 = scalar_select %p123, %s124, %s125
      %p129 = pneg %p123
      %p130 = scmp.eq.s32.totalorder %s20, 1
      %p131 = por %p129, %p130
      %p132 = scmp.ne.s32.totalorder %s124, %s127
      %p133 = scmp.eq.s32.totalorder %s20, 0
      %p134 = por %p132, %p133
      %p135 = scmp.ne.s32.totalorder %s124, %s127
      %p136 = scmp.eq.s32.totalorder %s25, 1
      %p137 = por %p135, %p136
      %p138 = scmp.ne.s32.totalorder %s127, %s128
      %p139 = scmp.eq.s32.totalorder %s25, 0
      %p140 = por %p138, %p139
      %p141 = scmp.ne.s32.totalorder %s127, %s128
      %p142 = scmp.eq.s32.totalorder %s26, 1
      %p143 = por %p141, %p142
      %p145 = scmp.ne.s32.totalorder %s128, %s144
      %p146 = scmp.eq.s32.totalorder %s26, 0
      %p147 = por %p145, %p146
      %p148 = scmp.le.s32.totalorder 1, %s20
      %p149 = scmp.lt.s32.totalorder %s20, 3
      %p150 = pnand %p148, %p149
      %p151 = pneg %p150
      // Predicated region
      $region9: #{tpu_custom_call.1} parent=5 // pred_check
        _
      $region10: #{tpu_custom_call.1} parent=5 // pred_check_branch
        %153 = sbr.rel (%p150) target = $region12
      $region11: #{tpu_custom_call.1} parent=5 // pred_region
        %s154 = ssub.s32 %s20, 1
        // Predicated region
        $region13: #{tpu_custom_call.1} parent=11 // pred_check
          %p155 = pneg %p93
        $region14: #{tpu_custom_call.1} parent=11 // pred_check_branch
          %157 = sbr.rel (%p155) target = $region16
        $region15: #{tpu_custom_call.1} parent=11 // pred_region
          %s159 = ssub.s32 512, 512
          %160 = vsyncadd [#allocation6], %s159
          %s161 = sshll.u32 [#allocation7], 4
          %s162 = int_to_ptr.vmem [resolvable:$true] %s161
          %167 = dma.hbm_to_vmem [thread:$0]  %s2, 512, %s162, [#allocation6], 128, 128, 8
        $region16: #{tpu_custom_call.1} parent=11 // pred_fallthru
          _
        // Predicated region
        $region17: #{tpu_custom_call.1} parent=11 // pred_check
          %p168 = pneg %p114
        $region18: #{tpu_custom_call.1} parent=11 // pred_check_branch
          %170 = sbr.rel (%p168) target = $region20
        $region19: #{tpu_custom_call.1} parent=11 // pred_region
          %s172 = ssub.s32 512, 512
          %173 = vsyncadd [#allocation9], %s172
          %s174 = sshll.u32 [#allocation8], 4
          %s175 = int_to_ptr.vmem [resolvable:$true] %s174
          %180 = dma.hbm_to_vmem [thread:$0]  %s3, 512, %s175, [#allocation9], 128, 128, 8
        $region20: #{tpu_custom_call.1} parent=11 // pred_fallthru
          _
      $region12: #{tpu_custom_call.1} parent=5 // pred_fallthru
        _
      %p181 = scmp.lt.s32.totalorder %s20, 2
      // Predicated region
      $region21: #{tpu_custom_call.1} parent=5 // pred_check
        %p182 = pneg %p181
      $region22: #{tpu_custom_call.1} parent=5 // pred_check_branch
        %184 = sbr.rel (%p182) target = $region24
      $region23: #{tpu_custom_call.1} parent=5 // pred_region
        // Predicated region
        $region25: #{tpu_custom_call.1} parent=23 // pred_check
          %p185 = pneg %p40
        $region26: #{tpu_custom_call.1} parent=23 // pred_check_branch
          %187 = sbr.rel (%p185) target = $region28
        $region27: #{tpu_custom_call.1} parent=23 // pred_region
          %s188 = sand.u32 %s30, 1
          %s189 = scalar_lea.sflag [#allocation3], %s188
          %s190 = sand.u32 %s30, 1
          %s191 = smul.addr %s190, 8
          %s192 = scalar_lea.vmem [#allocation2], %s191
          %s194 = ssub.s32 128, 128
          %195 = vsyncadd %s189, %s194
          %s196 = smul.addr %s20, 128
          %s197 = scalar_lea.hbm %s0, %s196
          %s199 = sshll.u32 %s192, 4
          %s200 = int_to_ptr.vmem [resolvable:$true] %s199
          %202 = dma.hbm_to_vmem [thread:$0]  %s197, 128, %s200, %s189
        $region28: #{tpu_custom_call.1} parent=23 // pred_fallthru
          _
        // Predicated region
        $region29: #{tpu_custom_call.1} parent=23 // pred_check
          %p203 = pneg %p66
        $region30: #{tpu_custom_call.1} parent=23 // pred_check_branch
          %205 = sbr.rel (%p203) target = $region32
        $region31: #{tpu_custom_call.1} parent=23 // pred_region
          %s206 = sand.u32 %s20, 1
          %s207 = scalar_lea.sflag [#allocation6], %s206
          %s208 = sand.u32 %s56, 1
          %s209 = smul.addr %s208, 64
          %s210 = scalar_lea.vmem [#allocation5], %s209
          %s211 = smul.u32 8, %s20
          %s213 = ssub.s32 1024, 1024
          %214 = vsyncadd %s207, %s213
          %s215 = smul.addr %s211, 128
          %s216 = scalar_lea.hbm %s1, %s215
          %s217 = sshll.u32 %s210, 4
          %s218 = int_to_ptr.vmem [resolvable:$true] %s217
          %223 = dma.hbm_to_vmem [thread:$0]  %s216, 1024, %s218, %s207, 128, 128, 8
        $region32: #{tpu_custom_call.1} parent=23 // pred_fallthru
          _
      $region24: #{tpu_custom_call.1} parent=5 // pred_fallthru
        _
      %p224 = scmp.le.s32.totalorder 1, %s20
      %p225 = scmp.lt.s32.totalorder %s20, 3
      %p226 = pnand %p224, %p225
      %p227 = pneg %p226
      // Predicated region
      $region33: #{tpu_custom_call.1} parent=5 // pred_check
        _
      $region34: #{tpu_custom_call.1} parent=5 // pred_check_branch
        %229 = sbr.rel (%p226) target = $region36
      $region35: #{tpu_custom_call.1} parent=5 // pred_region
        %s230 = ssub.s32 %s20, 1
        %s231 = sand.u32 %s33, 1
        %s232 = scalar_lea.sflag [#allocation3], %s231
        %s233 = sand.u32 %s33, 1
        %s234 = smul.addr %s233, 8
        %s235 = scalar_lea.vmem [#allocation2], %s234
        // Predicated region
        $region37: #{tpu_custom_call.1} parent=35 // pred_check
          %p236 = pneg %p46
        $region38: #{tpu_custom_call.1} parent=35 // pred_check_branch
          %238 = sbr.rel (%p236) target = $region40
        $region39: #{tpu_custom_call.1} parent=35 // pred_region
          %239 = dma.done %s232, 128
        $region40: #{tpu_custom_call.1} parent=35 // pred_fallthru
          _
        %s240 = sand.u32 %s25, 1
        %s241 = scalar_lea.sflag [#allocation6], %s240
        %s242 = sand.u32 %s59, 1
        %s243 = smul.addr %s242, 64
        %s244 = scalar_lea.vmem [#allocation5], %s243
        // Predicated region
        $region41: #{tpu_custom_call.1} parent=35 // pred_check
          %p245 = pneg %p72
        $region42: #{tpu_custom_call.1} parent=35 // pred_check_branch
          %247 = sbr.rel (%p245) target = $region44
        $region43: #{tpu_custom_call.1} parent=35 // pred_region
          %248 = dma.done %s241, 1024
        $region44: #{tpu_custom_call.1} parent=35 // pred_fallthru
          _
        // Predicated region
        $region45: #{tpu_custom_call.1} parent=35 // pred_check
          %p249 = pneg %p93
        $region46: #{tpu_custom_call.1} parent=35 // pred_check_branch
          %251 = sbr.rel (%p249) target = $region48
        $region47: #{tpu_custom_call.1} parent=35 // pred_region
          %252 = dma.done [#allocation6], 512
        $region48: #{tpu_custom_call.1} parent=35 // pred_fallthru
          _
        // Predicated region
        $region49: #{tpu_custom_call.1} parent=35 // pred_check
          %p253 = pneg %p114
        $region50: #{tpu_custom_call.1} parent=35 // pred_check_branch
          %255 = sbr.rel (%p253) target = $region52
        $region51: #{tpu_custom_call.1} parent=35 // pred_region
          %256 = dma.done [#allocation9], 512
        $region52: #{tpu_custom_call.1} parent=35 // pred_fallthru
          _
        %s257 = sand.u32 %s33, 1
        %s258 = scalar_lea.sflag [#allocation3], %s257
        %s259 = sand.u32 %s33, 1
        %s260 = smul.addr %s259, 8
        %s261 = scalar_lea.vmem [#allocation2], %s260
        %p262 = pneg %p46
        %p263 = pneg %p43
        %s264 = sand.u32 %s25, 1
        %s265 = scalar_lea.sflag [#allocation6], %s264
        %s266 = sand.u32 %s59, 1
        %s267 = smul.addr %s266, 64
        %s268 = scalar_lea.vmem [#allocation5], %s267
        %p269 = pneg %p72
        %p270 = pneg %p69
        %p271 = pneg %p93
        %p272 = pneg %p90
        %p273 = pneg %p114
        %p274 = pneg %p111
        %p275 = pneg %p140
        %p276 = pneg %p137
        %s277 = sand.u32 %s127, 1
        %s278 = scalar_lea.sflag [#allocation4], %s277
        %s279 = sand.u32 %s127, 1
        %s280 = smul.addr %s279, 8
        %s281 = scalar_lea.vmem [#allocation10], %s280
        %s282 = smul.u32 8, %s25
        %v283 = vld [vmem:[%s235] sm:$0xff]
        %v284 = vld [vmem:[#allocation7] sm:$0xff]
        %v285 = vld [vmem:[#allocation7 + $0x8] sm:$0xff]
        %v286 = vld [vmem:[#allocation7 + $0x10] sm:$0xff]
        %v287 = vld [vmem:[#allocation7 + $0x18] sm:$0xff]
        %v288 = vld [vmem:[%s244] sm:$0xff]
        %v289 = vld [vmem:[%s244 + $0x8] sm:$0xff]
        %v290 = vld [vmem:[%s244 + $0x10] sm:$0xff]
        %v291 = vld [vmem:[%s244 + $0x18] sm:$0xff]
        %v292 = vld [vmem:[%s244 + $0x20] sm:$0xff]
        %v293 = vld [vmem:[%s244 + $0x28] sm:$0xff]
        %v294 = vld [vmem:[%s244 + $0x30] sm:$0xff]
        %v295 = vld [vmem:[%s244 + $0x38] sm:$0xff]
        %vm296 = vcmask 261120
        %v297 = vsel %vm296, %v288, 0.0
        %v298 = vrot.slane %v297, 4
        %v299 = vadd.f32 %v297, %v298
        %v300 = vrot.slane %v299, 2
        %v301 = vadd.f32 %v299, %v300
        %v302 = vrot.slane %v301, 1
        %v303 = vadd.f32 %v301, %v302
        %v304 = vsel %vm296, %v289, 0.0
        %v305 = vrot.slane %v304, 4
        %v306 = vadd.f32 %v304, %v305
        %v307 = vrot.slane %v306, 2
        %v308 = vadd.f32 %v306, %v307
        %v309 = vrot.slane %v308, 1
        %v310 = vadd.f32 %v308, %v309
        %v311 = vsel %vm296, %v290, 0.0
        %v312 = vrot.slane %v311, 4
        %v313 = vadd.f32 %v311, %v312
        %v314 = vrot.slane %v313, 2
        %v315 = vadd.f32 %v313, %v314
        %v316 = vrot.slane %v315, 1
        %v317 = vadd.f32 %v315, %v316
        %v318 = vsel %vm296, %v291, 0.0
        %v319 = vrot.slane %v318, 4
        %v320 = vadd.f32 %v318, %v319
        %v321 = vrot.slane %v320, 2
        %v322 = vadd.f32 %v320, %v321
        %v323 = vrot.slane %v322, 1
        %v324 = vadd.f32 %v322, %v323
        %v325 = vsel %vm296, %v292, 0.0
        %v326 = vrot.slane %v325, 4
        %v327 = vadd.f32 %v325, %v326
        %v328 = vrot.slane %v327, 2
        %v329 = vadd.f32 %v327, %v328
        %v330 = vrot.slane %v329, 1
        %v331 = vadd.f32 %v329, %v330
        %v332 = vsel %vm296, %v293, 0.0
        %v333 = vrot.slane %v332, 4
        %v334 = vadd.f32 %v332, %v333
        %v335 = vrot.slane %v334, 2
        %v336 = vadd.f32 %v334, %v335
        %v337 = vrot.slane %v336, 1
        %v338 = vadd.f32 %v336, %v337
        %v339 = vsel %vm296, %v294, 0.0
        %v340 = vrot.slane %v339, 4
        %v341 = vadd.f32 %v339, %v340
        %v342 = vrot.slane %v341, 2
        %v343 = vadd.f32 %v341, %v342
        %v344 = vrot.slane %v343, 1
        %v345 = vadd.f32 %v343, %v344
        %v346 = vsel %vm296, %v295, 0.0
        %v347 = vrot.slane %v346, 4
        %v348 = vadd.f32 %v346, %v347
        %v349 = vrot.slane %v348, 2
        %v350 = vadd.f32 %v348, %v349
        %v351 = vrot.slane %v350, 1
        %v352 = vadd.f32 %v350, %v351
        %v353 = vmul.f32 %v303, 0.125
        %v354 = vmul.f32 %v310, 0.125
        %v355 = vmul.f32 %v317, 0.125
        %v356 = vmul.f32 %v324, 0.125
        %v357 = vmul.f32 %v331, 0.125
        %v358 = vmul.f32 %v338, 0.125
        %v359 = vmul.f32 %v345, 0.125
        %v360 = vmul.f32 %v352, 0.125
        %v361 = vld [vmem:[#allocation8] sm:$0xff]
        %v362 = vld [vmem:[#allocation8 + $0x8] sm:$0xff]
        %v363 = vld [vmem:[#allocation8 + $0x10] sm:$0xff]
        %v364 = vld [vmem:[#allocation8 + $0x18] sm:$0xff]
        %vm373 = vcmask 1041409
        %v374 = vsel %vm373, %v354, %v353
        %vm375 = vcmask 1042434
        %v376 = vsel %vm375, %v355, %v374
        %vm377 = vcmask 1043459
        %v378 = vsel %vm377, %v356, %v376
        %vm379 = vcmask 1044484
        %v380 = vsel %vm379, %v357, %v378
        %vm381 = vcmask 1045509
        %v382 = vsel %vm381, %v358, %v380
        %vm383 = vcmask 1046534
        %v384 = vsel %vm383, %v359, %v382
        %vm385 = vcmask 1047559
        %v386 = vsel %vm385, %v360, %v384
        %v387 = vsel %vm296, %v386, 0
        %389 = vmatprep.subr.mxu0 0.0
        %390 = vmatpush1.msra.mxu0 0.0
        %391 = vmatprep.subr.mxu0 0.0
        %392 = vmatpush1.msra.mxu0 0.0
        %393 = vmatprep.subr.mxu0 0.0
        %394 = vmatpush1.msra.mxu0 0.0
        %395 = vmatprep.subr.mxu0 0.0
        %396 = vmatpush1.msra.mxu0 0.0
        %397 = vmatprep.subr.mxu0 0.0
        %398 = vmatpush1.msra.mxu0 0.0
        %399 = vmatprep.subr.mxu0 0.0
        %400 = vmatpush1.msra.mxu0 0.0
        %401 = vmatprep.subr.mxu0 0.0
        %402 = vmatpush1.msra.mxu0 0.0
        %403 = vmatprep.subr.mxu0 0.0
        %404 = vmatpush1.msra.mxu0 0.0
        %405 = vmatprep.subr.mxu0 0.0
        %406 = vmatpush1.msra.mxu0 0.0
        %407 = vmatprep.subr.mxu0 0.0
        %408 = vmatpush1.msra.mxu0 0.0
        %409 = vmatprep.subr.mxu0 0.0
        %410 = vmatpush1.msra.mxu0 0.0
        %411 = vmatprep.subr.mxu0 0.0
        %412 = vmatpush1.msra.mxu0 0.0
        %413 = vmatprep.subr.mxu0 0.0
        %414 = vmatpush1.msra.mxu0 %v364
        %415 = vmatprep.subr.mxu0 0.0
        %416 = vmatpush1.msra.mxu0 %v363
        %417 = vmatprep.subr.mxu0 0.0
        %418 = vmatpush1.msra.mxu0 %v362
        %419 = vmatprep.subr.mxu0 0.0
        %420 = vmatpush1.msra.mxu0 %v361
        %421 = vmatprep.subr.mxu0 0.0
        %422 = vmatpush2.msra.mxu0 0.0
        %423 = vmatprep.subr.mxu0 0.0
        %424 = vmatpush2.msra.mxu0 0.0
        %425 = vmatprep.subr.mxu0 0.0
        %426 = vmatpush2.msra.mxu0 0.0
        %427 = vmatprep.subr.mxu0 0.0
        %428 = vmatpush2.msra.mxu0 0.0
        %429 = vmatprep.subr.mxu0 0.0
        %430 = vmatpush2.msra.mxu0 0.0
        %431 = vmatprep.subr.mxu0 0.0
        %432 = vmatpush2.msra.mxu0 0.0
        %433 = vmatprep.subr.mxu0 0.0
        %434 = vmatpush2.msra.mxu0 0.0
        %435 = vmatprep.subr.mxu0 0.0
        %436 = vmatpush2.msra.mxu0 0.0
        %437 = vmatprep.subr.mxu0 0.0
        %438 = vmatpush2.msra.mxu0 0.0
        %439 = vmatprep.subr.mxu0 0.0
        %440 = vmatpush2.msra.mxu0 0.0
        %441 = vmatprep.subr.mxu0 0.0
        %442 = vmatpush2.msra.mxu0 0.0
        %443 = vmatprep.subr.mxu0 0.0
        %444 = vmatpush2.msra.mxu0 0.0
        %445 = vmatprep.subr.mxu0 0.0
        %446 = vmatpush2.msra.mxu0 0.0
        %447 = vmatprep.subr.mxu0 0.0
        %448 = vmatpush2.msra.mxu0 0.0
        %449 = vmatprep.subr.mxu0 0.0
        %450 = vmatpush2.msra.mxu0 0.0
        %451 = vmatprep.subr.mxu0 0.0
        %452 = vmatpush2.msra.mxu0 0.0
        %453 = vmatprep.mubr.f32.mxu0 0.0
        %454 = vmatmul.mubr.f32.gmra.mxu0 %v387
        %v455 = vpop.f32.mrf.mxu0
        %v456 = vadd.f32 0.0, %v455
        %v457 = vpop.f32.mrf.mxu0
        %458 = vdwg.mxu0
        %v460 = vsel %vm296, %v283, 0
        %462 = vmatprep.subr.mxu0 0.0
        %463 = vmatpush1.msra.mxu0 0.0
        %464 = vmatprep.subr.mxu0 0.0
        %465 = vmatpush1.msra.mxu0 0.0
        %466 = vmatprep.subr.mxu0 0.0
        %467 = vmatpush1.msra.mxu0 0.0
        %468 = vmatprep.subr.mxu0 0.0
        %469 = vmatpush1.msra.mxu0 0.0
        %470 = vmatprep.subr.mxu0 0.0
        %471 = vmatpush1.msra.mxu0 0.0
        %472 = vmatprep.subr.mxu0 0.0
        %473 = vmatpush1.msra.mxu0 0.0
        %474 = vmatprep.subr.mxu0 0.0
        %475 = vmatpush1.msra.mxu0 0.0
        %476 = vmatprep.subr.mxu0 0.0
        %477 = vmatpush1.msra.mxu0 0.0
        %478 = vmatprep.subr.mxu0 0.0
        %479 = vmatpush1.msra.mxu0 0.0
        %480 = vmatprep.subr.mxu0 0.0
        %481 = vmatpush1.msra.mxu0 0.0
        %482 = vmatprep.subr.mxu0 0.0
        %483 = vmatpush1.msra.mxu0 0.0
        %484 = vmatprep.subr.mxu0 0.0
        %485 = vmatpush1.msra.mxu0 0.0
        %486 = vmatprep.subr.mxu0 0.0
        %487 = vmatpush1.msra.mxu0 %v287
        %488 = vmatprep.subr.mxu0 0.0
        %489 = vmatpush1.msra.mxu0 %v286
        %490 = vmatprep.subr.mxu0 0.0
        %491 = vmatpush1.msra.mxu0 %v285
        %492 = vmatprep.subr.mxu0 0.0
        %493 = vmatpush1.msra.mxu0 %v284
        %494 = vmatprep.subr.mxu0 0.0
        %495 = vmatpush2.msra.mxu0 0.0
        %496 = vmatprep.subr.mxu0 0.0
        %497 = vmatpush2.msra.mxu0 0.0
        %498 = vmatprep.subr.mxu0 0.0
        %499 = vmatpush2.msra.mxu0 0.0
        %500 = vmatprep.subr.mxu0 0.0
        %501 = vmatpush2.msra.mxu0 0.0
        %502 = vmatprep.subr.mxu0 0.0
        %503 = vmatpush2.msra.mxu0 0.0
        %504 = vmatprep.subr.mxu0 0.0
        %505 = vmatpush2.msra.mxu0 0.0
        %506 = vmatprep.subr.mxu0 0.0
        %507 = vmatpush2.msra.mxu0 0.0
        %508 = vmatprep.subr.mxu0 0.0
        %509 = vmatpush2.msra.mxu0 0.0
        %510 = vmatprep.subr.mxu0 0.0
        %511 = vmatpush2.msra.mxu0 0.0
        %512 = vmatprep.subr.mxu0 0.0
        %513 = vmatpush2.msra.mxu0 0.0
        %514 = vmatprep.subr.mxu0 0.0
        %515 = vmatpush2.msra.mxu0 0.0
        %516 = vmatprep.subr.mxu0 0.0
        %517 = vmatpush2.msra.mxu0 0.0
        %518 = vmatprep.subr.mxu0 0.0
        %519 = vmatpush2.msra.mxu0 0.0
        %520 = vmatprep.subr.mxu0 0.0
        %521 = vmatpush2.msra.mxu0 0.0
        %522 = vmatprep.subr.mxu0 0.0
        %523 = vmatpush2.msra.mxu0 0.0
        %524 = vmatprep.subr.mxu0 0.0
        %525 = vmatpush2.msra.mxu0 0.0
        %526 = vmatprep.mubr.f32.mxu0 0.0
        %527 = vmatmul.mubr.f32.gmra.mxu0 %v460
        %v528 = vpop.f32.mrf.mxu0
        %v529 = vadd.f32 %v456, %v528
        %v530 = vpop.f32.mrf.mxu0
        %531 = vdwg.mxu0
        %v532 = vmax.f32 %v529, 0.0
        %533 = vst [vmem:[%s281] sm:$0xff] %v532
        %s534 = sand.u32 %s127, 1
        %s535 = scalar_lea.sflag [#allocation4], %s534
        %s536 = sand.u32 %s127, 1
        %s537 = smul.addr %s536, 8
        %s538 = scalar_lea.vmem [#allocation10], %s537
        // Predicated region
        $region53: #{tpu_custom_call.1} parent=35 // pred_check
          %p539 = pneg %p137
        $region54: #{tpu_custom_call.1} parent=35 // pred_check_branch
          %541 = sbr.rel (%p539) target = $region56
        $region55: #{tpu_custom_call.1} parent=35 // pred_region
          %s543 = ssub.s32 128, 128
          %544 = vsyncadd %s535, %s543
          %s545 = smul.addr %s25, 128
          %s546 = scalar_lea.hbm %s4, %s545
          %s548 = sshll.u32 %s538, 4
          %s549 = int_to_ptr.vmem [resolvable:$true] %s548
          %551 = dma.vmem_to_hbm [thread:$0]  %s549, 128, %s546, %s535
        $region56: #{tpu_custom_call.1} parent=35 // pred_fallthru
          _
      $region36: #{tpu_custom_call.1} parent=5 // pred_fallthru
        _
      %p552 = scmp.le.s32.totalorder 2, %s20
      // Predicated region
      $region57: #{tpu_custom_call.1} parent=5 // pred_check
        %p553 = pneg %p552
      $region58: #{tpu_custom_call.1} parent=5 // pred_check_branch
        %555 = sbr.rel (%p553) target = $region60
      $region59: #{tpu_custom_call.1} parent=5 // pred_region
        %s556 = ssub.s32 %s20, 2
        // Predicated region
        $region61: #{tpu_custom_call.1} parent=59 // pred_check
          %p557 = pneg %p143
        $region62: #{tpu_custom_call.1} parent=59 // pred_check_branch
          %559 = sbr.rel (%p557) target = $region64
        $region63: #{tpu_custom_call.1} parent=59 // pred_region
          %s560 = sand.u32 %s128, 1
          %s561 = scalar_lea.sflag [#allocation4], %s560
          %s562 = sand.u32 %s128, 1
          %s563 = smul.addr %s562, 8
          %s564 = scalar_lea.vmem [#allocation10], %s563
          %565 = dma.done %s561, 128
        $region64: #{tpu_custom_call.1} parent=59 // pred_fallthru
          _
      $region60: #{tpu_custom_call.1} parent=5 // pred_fallthru
        _
    $region6: #{tpu_custom_call.1} parent=1 // loop_footer
      %s24 = sadd.s32 1, %s20
    $region7: #{tpu_custom_call.1} parent=1 // loop_footer_branch
      %19 = sbr.rel target = $region3
    $region8: #{tpu_custom_call.1} parent=1 // loop_exit
      _
    %566 = vsyncpa [#allocation3], 1
    %s567 = scalar_lea.sflag [#allocation3], 1
    %568 = vsyncpa %s567, 1
    %569 = vsyncpa [#allocation6], 1
    %s570 = scalar_lea.sflag [#allocation6], 1
    %571 = vsyncpa %s570, 1
    %572 = vsyncpa [#allocation9], 1
    %573 = vsyncpa [#allocation4], 1
    %s574 = scalar_lea.sflag [#allocation4], 1
    %575 = vsyncpa %s574, 1

// kernel: tpu_custom_call.1
$region0: #{tpu_custom_call.1}
  #allocation0 [shape = 'u32[]', space=smem, size = 0x4, offset = 0x4, fixed_abs, tag = 'smem constant byte address 0x4 - core index']
  #allocation1 [shape = 'u32[144,128]{1,0:T(1,128)}', space=vmem, size = 0x12000, scoped, tag = 'internal scratch']
  %s0 = inlined_call_operand.hbm [shape: f32[16,32], index: 0, kind: input, shape index: {}]
  %s1 = inlined_call_operand.hbm [shape: f32[16,8,32], index: 1, kind: input, shape index: {}]
  %s2 = inlined_call_operand.hbm [shape: f32[32,128], index: 2, kind: input, shape index: {}]
  %s3 = inlined_call_operand.hbm [shape: f32[32,128], index: 3, kind: input, shape index: {}]
  %s4 = inlined_call_operand.hbm [shape: f32[16,128], index: 4, kind: output, shape index: {}]
  %s5 = sld [smem:[#allocation0]]
  $region65: #{tpu_custom_call.1} parent=0
    _
  %s7 = ssub.s32 1, %s5
  %s8 = scalar_select 0, %s7, %s5
  $region1: #{tpu_custom_call.1} parent=0
    #allocation2 [shape = 'u8[8192]{0}', space=vmem, size = 0x2000, scoped, tag = 'input window, operand 0']
    #allocation3 [shape = 's32[2]{0}', space=sflag, size = 0x8, scoped, tag = 'scoped memory for tpu_custom_call.1']
    #allocation4 [shape = 's32[2]{0}', space=sflag, size = 0x8, scoped, tag = 'scoped memory for tpu_custom_call.1']
    #allocation5 [shape = 'u8[65536]{0}', space=vmem, size = 0x10000, scoped, tag = 'input window, operand 1']
    #allocation6 [shape = 's32[2]{0}', space=sflag, size = 0x8, scoped, tag = 'scoped memory for tpu_custom_call.1']
    #allocation7 [shape = 'u8[16384]{0}', space=vmem, size = 0x4000, scoped, tag = 'input window, operand 2, single buffered']
    #allocation8 [shape = 'u8[16384]{0}', space=vmem, size = 0x4000, scoped, tag = 'input window, operand 3, single buffered']
    #allocation9 [shape = 's32[1]{0}', space=sflag, size = 0x4, scoped, tag = 'scoped memory for tpu_custom_call.1']
    #allocation10 [shape = 'u8[8192]{0}', space=vmem, size = 0x2000, scoped, tag = 'output window, operand 0']
    %9 = vsyncpa [#allocation3], 0
    %s10 = scalar_lea.sflag [#allocation3], 1
    %11 = vsyncpa %s10, 0
    %12 = vsyncpa [#allocation6], 0
    %s13 = scalar_lea.sflag [#allocation6], 1
    %14 = vsyncpa %s13, 0
    %15 = vsyncpa [#allocation9], 0
    %16 = vsyncpa [#allocation4], 0
    %s17 = scalar_lea.sflag [#allocation4], 1
    %18 = vsyncpa %s17, 0
    loop: start=0, step=1, limit=4
    $region2: #{tpu_custom_call.1} parent=1 // loop_pre_header
      _
    $region3: #{tpu_custom_call.1} parent=1 // loop_header
      %s20 = sphi 0, %s24
      %p21 = scmp.ge.s32.totalorder %s20, 4
      %s30 = sphi 0, %s32
      %s33 = sphi 0, %s30
      %s34 = sphi 0, %s33
      %s50 = sphi 0, %s34
      %s56 = sphi 0, %s58
      %s59 = sphi 0, %s56
      %s60 = sphi 0, %s59
      %s76 = sphi 0, %s60
      %s80 = sphi 0, %s80
      %s82 = sphi 0, %s80
      %s83 = sphi 0, %s82
      %s97 = sphi 0, %s83
      %s101 = sphi 0, %s101
      %s103 = sphi 0, %s101
      %s104 = sphi 0, %s103
      %s118 = sphi 0, %s104
      %s124 = sphi 0, %s126
      %s127 = sphi 0, %s124
      %s128 = sphi 0, %s127
      %s144 = sphi 0, %s128
    $region4: #{tpu_custom_call.1} parent=1 // loop_header_branch
      %23 = sbr.rel (%p21) target = $region8
    $region5: #{tpu_custom_call.1} parent=1 // loop_body
      %s25 = ssub.s32 %s20, 1
      %s26 = ssub.s32 %s20, 2
      %s27 = sadd.s32 %s20, 1
      %s28 = ssub.s32 %s20, %s27
      %p29 = scmp.eq.s32.totalorder %s28, 0
      %s31 = sadd.s32 %s30, 1
      %s32 = scalar_select %p29, %s30, %s31
      %p35 = pneg %p29
      %p36 = scmp.eq.s32.totalorder %s20, 1
      %p37 = por %p35, %p36
      %p38 = scmp.ne.s32.totalorder %s30, %s33
      %p39 = scmp.eq.s32.totalorder %s20, 0
      %p40 = por %p38, %p39
      %p41 = scmp.ne.s32.totalorder %s30, %s33
      %p42 = scmp.eq.s32.totalorder %s25, 1
      %p43 = por %p41, %p42
      %p44 = scmp.ne.s32.totalorder %s33, %s34
      %p45 = scmp.eq.s32.totalorder %s25, 0
      %p46 = por %p44, %p45
      %p47 = scmp.ne.s32.totalorder %s33, %s34
      %p48 = scmp.eq.s32.totalorder %s26, 1
      %p49 = por %p47, %p48
      %p51 = scmp.ne.s32.totalorder %s34, %s50
      %p52 = scmp.eq.s32.totalorder %s26, 0
      %p53 = por %p51, %p52
      %s54 = ssub.s32 %s20, %s27
      %p55 = scmp.eq.s32.totalorder %s54, 0
      %s57 = sadd.s32 %s56, 1
      %s58 = scalar_select %p55, %s56, %s57
      %p61 = pneg %p55
      %p62 = scmp.eq.s32.totalorder %s20, 1
      %p63 = por %p61, %p62
      %p64 = scmp.ne.s32.totalorder %s56, %s59
      %p65 = scmp.eq.s32.totalorder %s20, 0
      %p66 = por %p64, %p65
      %p67 = scmp.ne.s32.totalorder %s56, %s59
      %p68 = scmp.eq.s32.totalorder %s25, 1
      %p69 = por %p67, %p68
      %p70 = scmp.ne.s32.totalorder %s59, %s60
      %p71 = scmp.eq.s32.totalorder %s25, 0
      %p72 = por %p70, %p71
      %p73 = scmp.ne.s32.totalorder %s59, %s60
      %p74 = scmp.eq.s32.totalorder %s26, 1
      %p75 = por %p73, %p74
      %p77 = scmp.ne.s32.totalorder %s60, %s76
      %p78 = scmp.eq.s32.totalorder %s26, 0
      %p79 = por %p77, %p78
      %s81 = sadd.s32 %s80, 1
      %p84 = scmp.eq.s32.totalorder %s20, 1
      %p85 = scmp.ne.s32.totalorder %s80, %s82
      %p86 = scmp.eq.s32.totalorder %s20, 0
      %p87 = por %p85, %p86
      %p88 = scmp.ne.s32.totalorder %s80, %s82
      %p89 = scmp.eq.s32.totalorder %s25, 1
      %p90 = por %p88, %p89
      %p91 = scmp.ne.s32.totalorder %s82, %s83
      %p92 = scmp.eq.s32.totalorder %s25, 0
      %p93 = por %p91, %p92
      %p94 = scmp.ne.s32.totalorder %s82, %s83
      %p95 = scmp.eq.s32.totalorder %s26, 1
      %p96 = por %p94, %p95
      %p98 = scmp.ne.s32.totalorder %s83, %s97
      %p99 = scmp.eq.s32.totalorder %s26, 0
      %p100 = por %p98, %p99
      %s102 = sadd.s32 %s101, 1
      %p105 = scmp.eq.s32.totalorder %s20, 1
      %p106 = scmp.ne.s32.totalorder %s101, %s103
      %p107 = scmp.eq.s32.totalorder %s20, 0
      %p108 = por %p106, %p107
      %p109 = scmp.ne.s32.totalorder %s101, %s103
      %p110 = scmp.eq.s32.totalorder %s25, 1
      %p111 = por %p109, %p110
      %p112 = scmp.ne.s32.totalorder %s103, %s104
      %p113 = scmp.eq.s32.totalorder %s25, 0
      %p114 = por %p112, %p113
      %p115 = scmp.ne.s32.totalorder %s103, %s104
      %p116 = scmp.eq.s32.totalorder %s26, 1
      %p117 = por %p115, %p116
      %p119 = scmp.ne.s32.totalorder %s104, %s118
      %p120 = scmp.eq.s32.totalorder %s26, 0
      %p121 = por %p119, %p120
      %s122 = ssub.s32 %s20, %s27
      %p123 = scmp.eq.s32.totalorder %s122, 0
      %s125 = sadd.s32 %s124, 1
      %s126 = scalar_select %p123, %s124, %s125
      %p129 = pneg %p123
      %p130 = scmp.eq.s32.totalorder %s20, 1
      %p131 = por %p129, %p130
      %p132 = scmp.ne.s32.totalorder %s124, %s127
      %p133 = scmp.eq.s32.totalorder %s20, 0
      %p134 = por %p132, %p133
      %p135 = scmp.ne.s32.totalorder %s124, %s127
      %p136 = scmp.eq.s32.totalorder %s25, 1
      %p137 = por %p135, %p136
      %p138 = scmp.ne.s32.totalorder %s127, %s128
      %p139 = scmp.eq.s32.totalorder %s25, 0
      %p140 = por %p138, %p139
      %p141 = scmp.ne.s32.totalorder %s127, %s128
      %p142 = scmp.eq.s32.totalorder %s26, 1
      %p143 = por %p141, %p142
      %p145 = scmp.ne.s32.totalorder %s128, %s144
      %p146 = scmp.eq.s32.totalorder %s26, 0
      %p147 = por %p145, %p146
      %p148 = scmp.le.s32.totalorder 1, %s20
      %p149 = scmp.lt.s32.totalorder %s20, 3
      %p150 = pnand %p148, %p149
      %p151 = pneg %p150
      // Predicated region
      $region9: #{tpu_custom_call.1} parent=5 // pred_check
        _
      $region10: #{tpu_custom_call.1} parent=5 // pred_check_branch
        %153 = sbr.rel (%p150) target = $region12
      $region11: #{tpu_custom_call.1} parent=5 // pred_region
        %s154 = ssub.s32 %s20, 1
        // Predicated region
        $region13: #{tpu_custom_call.1} parent=11 // pred_check
          %p155 = pneg %p93
        $region14: #{tpu_custom_call.1} parent=11 // pred_check_branch
          %157 = sbr.rel (%p155) target = $region16
        $region15: #{tpu_custom_call.1} parent=11 // pred_region
          %s159 = ssub.s32 512, 512
          %160 = vsyncadd [#allocation6], %s159
          %s161 = sshll.u32 [#allocation7], 4
          %s162 = int_to_ptr.vmem [resolvable:$true] %s161
          %167 = dma.hbm_to_vmem [thread:$0]  %s2, 512, %s162, [#allocation6], 128, 128, 8
        $region16: #{tpu_custom_call.1} parent=11 // pred_fallthru
          _
        // Predicated region
        $region17: #{tpu_custom_call.1} parent=11 // pred_check
          %p168 = pneg %p114
        $region18: #{tpu_custom_call.1} parent=11 // pred_check_branch
          %170 = sbr.rel (%p168) target = $region20
        $region19: #{tpu_custom_call.1} parent=11 // pred_region
          %s172 = ssub.s32 512, 512
          %173 = vsyncadd [#allocation9], %s172
          %s174 = sshll.u32 [#allocation8], 4
          %s175 = int_to_ptr.vmem [resolvable:$true] %s174
          %180 = dma.hbm_to_vmem [thread:$0]  %s3, 512, %s175, [#allocation9], 128, 128, 8
        $region20: #{tpu_custom_call.1} parent=11 // pred_fallthru
          _
      $region12: #{tpu_custom_call.1} parent=5 // pred_fallthru
        _
      %p181 = scmp.lt.s32.totalorder %s20, 2
      // Predicated region
      $region21: #{tpu_custom_call.1} parent=5 // pred_check
        %p182 = pneg %p181
      $region22: #{tpu_custom_call.1} parent=5 // pred_check_branch
        %184 = sbr.rel (%p182) target = $region24
      $region23: #{tpu_custom_call.1} parent=5 // pred_region
        // Predicated region
        $region25: #{tpu_custom_call.1} parent=23 // pred_check
          %p185 = pneg %p40
        $region26: #{tpu_custom_call.1} parent=23 // pred_check_branch
          %187 = sbr.rel (%p185) target = $region28
        $region27: #{tpu_custom_call.1} parent=23 // pred_region
          %s188 = sand.u32 %s30, 1
          %s189 = scalar_lea.sflag [#allocation3], %s188
          %s190 = sand.u32 %s30, 1
          %s191 = smul.addr %s190, 8
          %s192 = scalar_lea.vmem [#allocation2], %s191
          %s194 = ssub.s32 128, 128
          %195 = vsyncadd %s189, %s194
          %s196 = smul.addr %s20, 128
          %s197 = scalar_lea.hbm %s0, %s196
          %s199 = sshll.u32 %s192, 4
          %s200 = int_to_ptr.vmem [resolvable:$true] %s199
          %202 = dma.hbm_to_vmem [thread:$0]  %s197, 128, %s200, %s189
        $region28: #{tpu_custom_call.1} parent=23 // pred_fallthru
          _
        // Predicated region
        $region29: #{tpu_custom_call.1} parent=23 // pred_check
          %p203 = pneg %p66
        $region30: #{tpu_custom_call.1} parent=23 // pred_check_branch
          %205 = sbr.rel (%p203) target = $region32
        $region31: #{tpu_custom_call.1} parent=23 // pred_region
          %s206 = sand.u32 %s20, 1
          %s207 = scalar_lea.sflag [#allocation6], %s206
          %s208 = sand.u32 %s56, 1
          %s209 = smul.addr %s208, 64
          %s210 = scalar_lea.vmem [#allocation5], %s209
          %s211 = smul.u32 8, %s20
          %s213 = ssub.s32 1024, 1024
          %214 = vsyncadd %s207, %s213
          %s215 = smul.addr %s211, 128
          %s216 = scalar_lea.hbm %s1, %s215
          %s217 = sshll.u32 %s210, 4
          %s218 = int_to_ptr.vmem [resolvable:$true] %s217
          %223 = dma.hbm_to_vmem [thread:$0]  %s216, 1024, %s218, %s207, 128, 128, 8
        $region32: #{tpu_custom_call.1} parent=23 // pred_fallthru
          _
      $region24: #{tpu_custom_call.1} parent=5 // pred_fallthru
        _
      %p224 = scmp.le.s32.totalorder 1, %s20
      %p225 = scmp.lt.s32.totalorder %s20, 3
      %p226 = pnand %p224, %p225
      %p227 = pneg %p226
      // Predicated region
      $region33: #{tpu_custom_call.1} parent=5 // pred_check
        _
      $region34: #{tpu_custom_call.1} parent=5 // pred_check_branch
        %229 = sbr.rel (%p226) target = $region36
      $region35: #{tpu_custom_call.1} parent=5 // pred_region
        %s230 = ssub.s32 %s20, 1
        %s231 = sand.u32 %s33, 1
        %s232 = scalar_lea.sflag [#allocation3], %s231
        %s233 = sand.u32 %s33, 1
        %s234 = smul.addr %s233, 8
        %s235 = scalar_lea.vmem [#allocation2], %s234
        // Predicated region
        $region37: #{tpu_custom_call.1} parent=35 // pred_check
          %p236 = pneg %p46
        $region38: #{tpu_custom_call.1} parent=35 // pred_check_branch
          %238 = sbr.rel (%p236) target = $region40
        $region39: #{tpu_custom_call.1} parent=35 // pred_region
          %239 = dma.done %s232, 128
        $region40: #{tpu_custom_call.1} parent=35 // pred_fallthru
          _
        %s240 = sand.u32 %s25, 1
        %s241 = scalar_lea.sflag [#allocation6], %s240
        %s242 = sand.u32 %s59, 1
        %s243 = smul.addr %s242, 64
        %s244 = scalar_lea.vmem [#allocation5], %s243
        // Predicated region
        $region41: #{tpu_custom_call.1} parent=35 // pred_check
          %p245 = pneg %p72
        $region42: #{tpu_custom_call.1} parent=35 // pred_check_branch
          %247 = sbr.rel (%p245) target = $region44
        $region43: #{tpu_custom_call.1} parent=35 // pred_region
          %248 = dma.done %s241, 1024
        $region44: #{tpu_custom_call.1} parent=35 // pred_fallthru
          _
        // Predicated region
        $region45: #{tpu_custom_call.1} parent=35 // pred_check
          %p249 = pneg %p93
        $region46: #{tpu_custom_call.1} parent=35 // pred_check_branch
          %251 = sbr.rel (%p249) target = $region48
        $region47: #{tpu_custom_call.1} parent=35 // pred_region
          %252 = dma.done [#allocation6], 512
        $region48: #{tpu_custom_call.1} parent=35 // pred_fallthru
          _
        // Predicated region
        $region49: #{tpu_custom_call.1} parent=35 // pred_check
          %p253 = pneg %p114
        $region50: #{tpu_custom_call.1} parent=35 // pred_check_branch
          %255 = sbr.rel (%p253) target = $region52
        $region51: #{tpu_custom_call.1} parent=35 // pred_region
          %256 = dma.done [#allocation9], 512
        $region52: #{tpu_custom_call.1} parent=35 // pred_fallthru
          _
        %s257 = sand.u32 %s33, 1
        %s258 = scalar_lea.sflag [#allocation3], %s257
        %s259 = sand.u32 %s33, 1
        %s260 = smul.addr %s259, 8
        %s261 = scalar_lea.vmem [#allocation2], %s260
        %p262 = pneg %p46
        %p263 = pneg %p43
        %s264 = sand.u32 %s25, 1
        %s265 = scalar_lea.sflag [#allocation6], %s264
        %s266 = sand.u32 %s59, 1
        %s267 = smul.addr %s266, 64
        %s268 = scalar_lea.vmem [#allocation5], %s267
        %p269 = pneg %p72
        %p270 = pneg %p69
        %p271 = pneg %p93
        %p272 = pneg %p90
        %p273 = pneg %p114
        %p274 = pneg %p111
        %p275 = pneg %p140
        %p276 = pneg %p137
        %s277 = sand.u32 %s127, 1
        %s278 = scalar_lea.sflag [#allocation4], %s277
        %s279 = sand.u32 %s127, 1
        %s280 = smul.addr %s279, 8
        %s281 = scalar_lea.vmem [#allocation10], %s280
        %s282 = smul.u32 8, %s25
        %v283 = vld [vmem:[%s235] sm:$0xff]
        %v284 = vld [vmem:[#allocation7] sm:$0xff]
        %v285 = vld [vmem:[#allocation7 + $0x8] sm:$0xff]
        %v286 = vld [vmem:[#allocation7 + $0x10] sm:$0xff]
        %v287 = vld [vmem:[#allocation7 + $0x18] sm:$0xff]
        %v288 = vld [vmem:[%s244] sm:$0xff]
        %v289 = vld [vmem:[%s244 + $0x8] sm:$0xff]
        %v290 = vld [vmem:[%s244 + $0x10] sm:$0xff]
        %v291 = vld [vmem:[%s244 + $0x18] sm:$0xff]
        %v292 = vld [vmem:[%s244 + $0x20] sm:$0xff]
        %v293 = vld [vmem:[%s244 + $0x28] sm:$0xff]
        %v294 = vld [vmem:[%s244 + $0x30] sm:$0xff]
        %v295 = vld [vmem:[%s244 + $0x38] sm:$0xff]
        %vm296 = vcmask 261120
        %v297 = vsel %vm296, %v288, 0.0
        %v298 = vrot.slane %v297, 4
        %v299 = vadd.f32 %v297, %v298
        %v300 = vrot.slane %v299, 2
        %v301 = vadd.f32 %v299, %v300
        %v302 = vrot.slane %v301, 1
        %v303 = vadd.f32 %v301, %v302
        %v304 = vsel %vm296, %v289, 0.0
        %v305 = vrot.slane %v304, 4
        %v306 = vadd.f32 %v304, %v305
        %v307 = vrot.slane %v306, 2
        %v308 = vadd.f32 %v306, %v307
        %v309 = vrot.slane %v308, 1
        %v310 = vadd.f32 %v308, %v309
        %v311 = vsel %vm296, %v290, 0.0
        %v312 = vrot.slane %v311, 4
        %v313 = vadd.f32 %v311, %v312
        %v314 = vrot.slane %v313, 2
        %v315 = vadd.f32 %v313, %v314
        %v316 = vrot.slane %v315, 1
        %v317 = vadd.f32 %v315, %v316
        %v318 = vsel %vm296, %v291, 0.0
        %v319 = vrot.slane %v318, 4
        %v320 = vadd.f32 %v318, %v319
        %v321 = vrot.slane %v320, 2
        %v322 = vadd.f32 %v320, %v321
        %v323 = vrot.slane %v322, 1
        %v324 = vadd.f32 %v322, %v323
        %v325 = vsel %vm296, %v292, 0.0
        %v326 = vrot.slane %v325, 4
        %v327 = vadd.f32 %v325, %v326
        %v328 = vrot.slane %v327, 2
        %v329 = vadd.f32 %v327, %v328
        %v330 = vrot.slane %v329, 1
        %v331 = vadd.f32 %v329, %v330
        %v332 = vsel %vm296, %v293, 0.0
        %v333 = vrot.slane %v332, 4
        %v334 = vadd.f32 %v332, %v333
        %v335 = vrot.slane %v334, 2
        %v336 = vadd.f32 %v334, %v335
        %v337 = vrot.slane %v336, 1
        %v338 = vadd.f32 %v336, %v337
        %v339 = vsel %vm296, %v294, 0.0
        %v340 = vrot.slane %v339, 4
        %v341 = vadd.f32 %v339, %v340
        %v342 = vrot.slane %v341, 2
        %v343 = vadd.f32 %v341, %v342
        %v344 = vrot.slane %v343, 1
        %v345 = vadd.f32 %v343, %v344
        %v346 = vsel %vm296, %v295, 0.0
        %v347 = vrot.slane %v346, 4
        %v348 = vadd.f32 %v346, %v347
        %v349 = vrot.slane %v348, 2
        %v350 = vadd.f32 %v348, %v349
        %v351 = vrot.slane %v350, 1
        %v352 = vadd.f32 %v350, %v351
        %v353 = vmul.f32 %v303, 0.125
        %v354 = vmul.f32 %v310, 0.125
        %v355 = vmul.f32 %v317, 0.125
        %v356 = vmul.f32 %v324, 0.125
        %v357 = vmul.f32 %v331, 0.125
        %v358 = vmul.f32 %v338, 0.125
        %v359 = vmul.f32 %v345, 0.125
        %v360 = vmul.f32 %v352, 0.125
        %v361 = vld [vmem:[#allocation8] sm:$0xff]
        %v362 = vld [vmem:[#allocation8 + $0x8] sm:$0xff]
        %v363 = vld [vmem:[#allocation8 + $0x10] sm:$0xff]
        %v364 = vld [vmem:[#allocation8 + $0x18] sm:$0xff]
        %vm373 = vcmask 1041409
        %v374 = vsel %vm373, %v354, %v353
        %vm375 = vcmask 1042434
        %v376 = vsel %vm375, %v355, %v374
        %vm377 = vcmask 1043459
        %v378 = vsel %vm377, %v356, %v376
        %vm379 = vcmask 1044484
        %v380 = vsel %vm379, %v357, %v378
        %vm381 = vcmask 1045509
        %v382 = vsel %vm381, %v358, %v380
        %vm383 = vcmask 1046534
        %v384 = vsel %vm383, %v359, %v382
        %vm385 = vcmask 1047559
        %v386 = vsel %vm385, %v360, %v384
        %v387 = vsel %vm296, %v386, 0
        %389 = vmatprep.subr.mxu0 0.0
        %390 = vmatpush1.msra.mxu0 0.0
        %391 = vmatprep.subr.mxu0 0.0
        %392 = vmatpush1.msra.mxu0 0.0
        %393 = vmatprep.subr.mxu0 0.0
        %394 = vmatpush1.msra.mxu0 0.0
        %395 = vmatprep.subr.mxu0 0.0
        %396 = vmatpush1.msra.mxu0 0.0
        %397 = vmatprep.subr.mxu0 0.0
        %398 = vmatpush1.msra.mxu0 0.0
        %399 = vmatprep.subr.mxu0 0.0
        %400 = vmatpush1.msra.mxu0 0.0
        %401 = vmatprep.subr.mxu0 0.0
        %402 = vmatpush1.msra.mxu0 0.0
        %403 = vmatprep.subr.mxu0 0.0
        %404 = vmatpush1.msra.mxu0 0.0
        %405 = vmatprep.subr.mxu0 0.0
        %406 = vmatpush1.msra.mxu0 0.0
        %407 = vmatprep.subr.mxu0 0.0
        %408 = vmatpush1.msra.mxu0 0.0
        %409 = vmatprep.subr.mxu0 0.0
        %410 = vmatpush1.msra.mxu0 0.0
        %411 = vmatprep.subr.mxu0 0.0
        %412 = vmatpush1.msra.mxu0 0.0
        %413 = vmatprep.subr.mxu0 0.0
        %414 = vmatpush1.msra.mxu0 %v364
        %415 = vmatprep.subr.mxu0 0.0
        %416 = vmatpush1.msra.mxu0 %v363
        %417 = vmatprep.subr.mxu0 0.0
        %418 = vmatpush1.msra.mxu0 %v362
        %419 = vmatprep.subr.mxu0 0.0
        %420 = vmatpush1.msra.mxu0 %v361
        %421 = vmatprep.subr.mxu0 0.0
        %422 = vmatpush2.msra.mxu0 0.0
        %423 = vmatprep.subr.mxu0 0.0
        %424 = vmatpush2.msra.mxu0 0.0
        %425 = vmatprep.subr.mxu0 0.0
        %426 = vmatpush2.msra.mxu0 0.0
        %427 = vmatprep.subr.mxu0 0.0
        %428 = vmatpush2.msra.mxu0 0.0
        %429 = vmatprep.subr.mxu0 0.0
        %430 = vmatpush2.msra.mxu0 0.0
        %431 = vmatprep.subr.mxu0 0.0
        %432 = vmatpush2.msra.mxu0 0.0
        %433 = vmatprep.subr.mxu0 0.0
        %434 = vmatpush2.msra.mxu0 0.0
        %435 = vmatprep.subr.mxu0 0.0
        %436 = vmatpush2.msra.mxu0 0.0
        %437 = vmatprep.subr.mxu0 0.0
        %438 = vmatpush2.msra.mxu0 0.0
        %439 = vmatprep.subr.mxu0 0.0
        %440 = vmatpush2.msra.mxu0 0.0
        %441 = vmatprep.subr.mxu0 0.0
        %442 = vmatpush2.msra.mxu0 0.0
        %443 = vmatprep.subr.mxu0 0.0
        %444 = vmatpush2.msra.mxu0 0.0
        %445 = vmatprep.subr.mxu0 0.0
        %446 = vmatpush2.msra.mxu0 0.0
        %447 = vmatprep.subr.mxu0 0.0
        %448 = vmatpush2.msra.mxu0 0.0
        %449 = vmatprep.subr.mxu0 0.0
        %450 = vmatpush2.msra.mxu0 0.0
        %451 = vmatprep.subr.mxu0 0.0
        %452 = vmatpush2.msra.mxu0 0.0
        %453 = vmatprep.mubr.f32.mxu0 0.0
        %454 = vmatmul.mubr.f32.gmra.mxu0 %v387
        %v455 = vpop.f32.mrf.mxu0
        %v456 = vadd.f32 0.0, %v455
        %v457 = vpop.f32.mrf.mxu0
        %458 = vdwg.mxu0
        %v460 = vsel %vm296, %v283, 0
        %462 = vmatprep.subr.mxu0 0.0
        %463 = vmatpush1.msra.mxu0 0.0
        %464 = vmatprep.subr.mxu0 0.0
        %465 = vmatpush1.msra.mxu0 0.0
        %466 = vmatprep.subr.mxu0 0.0
        %467 = vmatpush1.msra.mxu0 0.0
        %468 = vmatprep.subr.mxu0 0.0
        %469 = vmatpush1.msra.mxu0 0.0
        %470 = vmatprep.subr.mxu0 0.0
        %471 = vmatpush1.msra.mxu0 0.0
        %472 = vmatprep.subr.mxu0 0.0
        %473 = vmatpush1.msra.mxu0 0.0
        %474 = vmatprep.subr.mxu0 0.0
        %475 = vmatpush1.msra.mxu0 0.0
        %476 = vmatprep.subr.mxu0 0.0
        %477 = vmatpush1.msra.mxu0 0.0
        %478 = vmatprep.subr.mxu0 0.0
        %479 = vmatpush1.msra.mxu0 0.0
        %480 = vmatprep.subr.mxu0 0.0
        %481 = vmatpush1.msra.mxu0 0.0
        %482 = vmatprep.subr.mxu0 0.0
        %483 = vmatpush1.msra.mxu0 0.0
        %484 = vmatprep.subr.mxu0 0.0
        %485 = vmatpush1.msra.mxu0 0.0
        %486 = vmatprep.subr.mxu0 0.0
        %487 = vmatpush1.msra.mxu0 %v287
        %488 = vmatprep.subr.mxu0 0.0
        %489 = vmatpush1.msra.mxu0 %v286
        %490 = vmatprep.subr.mxu0 0.0
        %491 = vmatpush1.msra.mxu0 %v285
        %492 = vmatprep.subr.mxu0 0.0
        %493 = vmatpush1.msra.mxu0 %v284
        %494 = vmatprep.subr.mxu0 0.0
        %495 = vmatpush2.msra.mxu0 0.0
        %496 = vmatprep.subr.mxu0 0.0
        %497 = vmatpush2.msra.mxu0 0.0
        %498 = vmatprep.subr.mxu0 0.0
        %499 = vmatpush2.msra.mxu0 0.0
        %500 = vmatprep.subr.mxu0 0.0
        %501 = vmatpush2.msra.mxu0 0.0
        %502 = vmatprep.subr.mxu0 0.0
        %503 = vmatpush2.msra.mxu0 0.0
        %504 = vmatprep.subr.mxu0 0.0
        %505 = vmatpush2.msra.mxu0 0.0
        %506 = vmatprep.subr.mxu0 0.0
        %507 = vmatpush2.msra.mxu0 0.0
        %508 = vmatprep.subr.mxu0 0.0
        %509 = vmatpush2.msra.mxu0 0.0
        %510 = vmatprep.subr.mxu0 0.0
        %511 = vmatpush2.msra.mxu0 0.0
        %512 = vmatprep.subr.mxu0 0.0
        %513 = vmatpush2.msra.mxu0 0.0
        %514 = vmatprep.subr.mxu0 0.0
        %515 = vmatpush2.msra.mxu0 0.0
        %516 = vmatprep.subr.mxu0 0.0
        %517 = vmatpush2.msra.mxu0 0.0
        %518 = vmatprep.subr.mxu0 0.0
        %519 = vmatpush2.msra.mxu0 0.0
        %520 = vmatprep.subr.mxu0 0.0
        %521 = vmatpush2.msra.mxu0 0.0
        %522 = vmatprep.subr.mxu0 0.0
        %523 = vmatpush2.msra.mxu0 0.0
        %524 = vmatprep.subr.mxu0 0.0
        %525 = vmatpush2.msra.mxu0 0.0
        %526 = vmatprep.mubr.f32.mxu0 0.0
        %527 = vmatmul.mubr.f32.gmra.mxu0 %v460
        %v528 = vpop.f32.mrf.mxu0
        %v529 = vadd.f32 %v456, %v528
        %v530 = vpop.f32.mrf.mxu0
        %531 = vdwg.mxu0
        %v532 = vmax.f32 %v529, 0.0
        %533 = vst [vmem:[%s281] sm:$0xff] %v532
        %s534 = sand.u32 %s127, 1
        %s535 = scalar_lea.sflag [#allocation4], %s534
        %s536 = sand.u32 %s127, 1
        %s537 = smul.addr %s536, 8
        %s538 = scalar_lea.vmem [#allocation10], %s537
        // Predicated region
        $region53: #{tpu_custom_call.1} parent=35 // pred_check
          %p539 = pneg %p137
        $region54: #{tpu_custom_call.1} parent=35 // pred_check_branch
          %541 = sbr.rel (%p539) target = $region56
        $region55: #{tpu_custom_call.1} parent=35 // pred_region
          %s543 = ssub.s32 128, 128
          %544 = vsyncadd %s535, %s543
          %s545 = smul.addr %s25, 128
          %s546 = scalar_lea.hbm %s4, %s545
          %s548 = sshll.u32 %s538, 4
          %s549 = int_to_ptr.vmem [resolvable:$true] %s548
          %551 = dma.vmem_to_hbm [thread:$0]  %s549, 128, %s546, %s535
        $region56: #{tpu_custom_call.1} parent=35 // pred_fallthru
          _
      $region36: #{tpu_custom_call.1} parent=5 // pred_fallthru
        _
      %p552 = scmp.le.s32.totalorder 2, %s20
      // Predicated region
      $region57: #{tpu_custom_call.1} parent=5 // pred_check
        %p553 = pneg %p552
      $region58: #{tpu_custom_call.1} parent=5 // pred_check_branch
        %555 = sbr.rel (%p553) target = $region60
      $region59: #{tpu_custom_call.1} parent=5 // pred_region
        %s556 = ssub.s32 %s20, 2
        // Predicated region
        $region61: #{tpu_custom_call.1} parent=59 // pred_check
          %p557 = pneg %p143
        $region62: #{tpu_custom_call.1} parent=59 // pred_check_branch
          %559 = sbr.rel (%p557) target = $region64
        $region63: #{tpu_custom_call.1} parent=59 // pred_region
          %s560 = sand.u32 %s128, 1
          %s561 = scalar_lea.sflag [#allocation4], %s560
          %s562 = sand.u32 %s128, 1
          %s563 = smul.addr %s562, 8
          %s564 = scalar_lea.vmem [#allocation10], %s563
          %565 = dma.done %s561, 128
        $region64: #{tpu_custom_call.1} parent=59 // pred_fallthru
          _
      $region60: #{tpu_custom_call.1} parent=5 // pred_fallthru
        _
    $region6: #{tpu_custom_call.1} parent=1 // loop_footer
      %s24 = sadd.s32 1, %s20
    $region7: #{tpu_custom_call.1} parent=1 // loop_footer_branch
      %19 = sbr.rel target = $region3
    $region8: #{tpu_custom_call.1} parent=1 // loop_exit
      _
    %566 = vsyncpa [#allocation3], 1
    %s567 = scalar_lea.sflag [#allocation3], 1
    %568 = vsyncpa %s567, 1
    %569 = vsyncpa [#allocation6], 1
    %s570 = scalar_lea.sflag [#allocation6], 1
    %571 = vsyncpa %s570, 1
    %572 = vsyncpa [#allocation9], 1
    %573 = vsyncpa [#allocation4], 1
    %s574 = scalar_lea.sflag [#allocation4], 1
    %575 = vsyncpa %s574, 1

</llo_original>
